<compile_context>
chip_gen: v5e
topology: v5e:2x2
jax: 0.10.0
libtpu: 0.0.40
codegen_flags: <defaults>
</compile_context>

<pallas_src>
import functools

import numpy as np
import jax
import jax.numpy as jnp
from jax.experimental import pallas as pl
from jax.experimental.pallas import tpu as pltpu


# ---------------------------------------------------------------------------
# Fast path: Mn % 128 == 0  ->  sublane-dense (C, R, 128) class slabs.
# ---------------------------------------------------------------------------
def _wce_kernel_dense(x_ref, t_ref, denom_ref, nll_ref, cnt_ref, *,
                      rows_total, tiles_total, tiles_inner, acc_rows,
                      ignore_index, ignore_in_range, ragged, overhang):
    """One (batch n, outer o, row-tile i) grid step.

    x_ref:   (C, R, 128) logits tile          (sublane-dense per class)
    t_ref:   (R, 128)    int32 targets tile
    denom_ref / nll_ref / cnt_ref: (C, acc_rows, 128) resident accumulators
    """
    o = pl.program_id(1)
    i = pl.program_id(2)

    @pl.when(i == 0)
    def _init():
        denom_ref[...] = jnp.zeros_like(denom_ref)
        nll_ref[...] = jnp.zeros_like(nll_ref)
        cnt_ref[...] = jnp.zeros_like(cnt_ref)

    g = o * tiles_inner + i                        # global row-tile index
    C, R, L = x_ref.shape
    folds = R // acc_rows

    def fold(v):                                   # (R, L) -> (acc_rows, L)
        if folds == 1:
            return v
        out = v[:acc_rows]
        for k in range(1, folds):
            out = out + v[k * acc_rows:(k + 1) * acc_rows]
        return out

    def body(mask_rows):
        t = t_ref[...].astype(jnp.int32)           # (R, L)
        if mask_rows:
            row = g * R + jax.lax.broadcasted_iota(jnp.int32, (R, L), 0)
            valid = row < rows_total
        # Per-class slabs; garbage rows of the (auto-padded) last tile are
        # zeroed BEFORE exp so no NaN/Inf can survive a 0-multiply.
        xs = []
        for c in range(C):
            xc = x_ref[c].astype(jnp.float32)      # (R, L), full vregs
            if mask_rows:
                xc = jnp.where(valid, xc, 0.0)
            xs.append(xc)
        # Softmax over the class axis == C-1 full-width elementwise max/add.
        mx = xs[0]
        for c in range(1, C):
            mx = jnp.maximum(mx, xs[c])
        es = [jnp.exp(xc - mx) for xc in xs]       # EUP, dense vregs
        s = es[0]
        for c in range(1, C):
            s = s + es[c]
        inv_s = pl.reciprocal(s, approx=False)     # exact: feeds class weights
        logs = mx + jnp.log(s)                     # for -log_softmax
        for c in range(C):
            p_c = es[c] * inv_s                    # softmax[c]
            sel = t == c
            if ignore_in_range:                    # only if ignore_index in [0,C)
                sel = jnp.logical_and(sel, t != ignore_index)
            if mask_rows:
                p_c = jnp.where(valid, p_c, 0.0)
                sel = jnp.logical_and(sel, valid)
            selm = sel.astype(jnp.float32)
            denom_ref[c] += fold(p_c)              # sum softmax per class
            nll_ref[c] += fold(selm * (logs - xs[c]))  # sum NLL where target==c
            cnt_ref[c] += fold(selm)               # count  where target==c

    if ragged:
        @pl.when(g == tiles_total - 1)
        def _():
            body(True)

        @pl.when(g < tiles_total - 1)
        def _():
            body(False)
    elif overhang:
        @pl.when(g < tiles_total)
        def _():
            body(False)
    else:
        body(False)


def _run_dense(xr, tr, ignore_index, ignore_in_range, tile_rows):
    N, C, Mn = xr.shape
    rows_total = Mn // 128
    x4 = xr.reshape(N, C, rows_total, 128)         # free reshape
    t3 = tr.reshape(N, rows_total, 128)            # free reshape

    R = max(64, (min(int(tile_rows), rows_total) // 64) * 64)
    if R >= rows_total:
        R, T, acc_rows, ragged = rows_total, 1, rows_total, False
    else:
        T = -(-rows_total // R)
        acc_rows = 64
        ragged = (rows_total % R) != 0

    # v7x has 2 TensorCores: guarantee a 'parallel' axis of extent >= 2 when
    # N == 1 by splitting the row-tile axis into (outer parallel, inner arb).
    n_outer = 2 if (N == 1 and T >= 2) else 1
    t_inner = -(-T // n_outer)
    overhang = (n_outer * t_inner) != T

    def x_index(n, o, i):
        g = o * t_inner + i
        if overhang:
            g = jnp.minimum(g, T - 1)              # clamp duplicate slot's DMA
        return (n, 0, g, 0)

    def t_index(n, o, i):
        g = o * t_inner + i
        if overhang:
            g = jnp.minimum(g, T - 1)
        return (n, g, 0)

    def acc_index(n, o, i):
        return (n * n_outer + o, 0, 0, 0)

    acc_shape = jax.ShapeDtypeStruct((N * n_outer, C, acc_rows, 128),
                                     jnp.float32)
    acc_spec = pl.BlockSpec((pl.Squeezed(), C, acc_rows, 128), acc_index)

    # VMEM: double-buffered inputs + resident accumulators + temporaries
    # headroom, capped well under v7x's 64 MiB physical VMEM.
    xblk = C * R * 128 * x4.dtype.itemsize
    tblk = R * 128 * t3.dtype.itemsize
    accblk = C * acc_rows * 128 * 4
    vmem_limit = 2 * (xblk + tblk) + 3 * accblk + 10 * C * R * 128 * 4 + (4 << 20)
    vmem_limit = int(max(16 << 20, min(48 << 20, vmem_limit)))

    kernel = functools.partial(
        _wce_kernel_dense, rows_total=rows_total, tiles_total=T,
        tiles_inner=t_inner, acc_rows=acc_rows, ignore_index=ignore_index,
        ignore_in_range=ignore_in_range, ragged=ragged, overhang=overhang)

    denom, nll_s, cnt = pl.pallas_call(
        kernel,
        out_shape=(acc_shape, acc_shape, acc_shape),
        grid_spec=pltpu.PrefetchScalarGridSpec(
            num_scalar_prefetch=0,
            grid=(N, n_outer, t_inner),
            in_specs=[
                # Only add pl.Buffered(3) here if xprof still shows exposed
                # DMA after the larger tiles (double-buffering suffices now).
                pl.BlockSpec((pl.Squeezed(), C, R, 128), x_index),
                pl.BlockSpec((pl.Squeezed(), R, 128), t_index),
            ],
            out_specs=(acc_spec, acc_spec, acc_spec),
        ),
        compiler_params=pltpu.CompilerParams(
            dimension_semantics=("parallel", "parallel", "arbitrary"),
            vmem_limit_bytes=vmem_limit),
    )(x4, t3)

    denom_c = jnp.sum(denom, axis=(0, 2, 3))
    nll_c = jnp.sum(nll_s, axis=(0, 2, 3))
    cnt_c = jnp.sum(cnt, axis=(0, 2, 3))
    return denom_c, nll_c, cnt_c


# ---------------------------------------------------------------------------
# Fallback: Mn % 128 != 0  ->  lane-major (C, TM) tiles, no extra HBM passes.
# ---------------------------------------------------------------------------
def _wce_kernel_lanes(x_ref, t_ref, denom_ref, nll_ref, cnt_ref, *,
                      mn, ignore_index, ignore_in_range, ragged):
    i = pl.program_id(1)

    @pl.when(i == 0)
    def _init():
        denom_ref[...] = jnp.zeros_like(denom_ref)
        nll_ref[...] = jnp.zeros_like(nll_ref)
        cnt_ref[...] = jnp.zeros_like(cnt_ref)

    def body(mask_cols):
        x = x_ref[...].astype(jnp.float32)         # (C, TM)
        t = t_ref[...].astype(jnp.int32)           # (1, TM)
        C, TM = x.shape
        if mask_cols:
            col = i * TM + jax.lax.broadcasted_iota(jnp.int32, (1, TM), 1)
            valid = col < mn
            x = jnp.where(valid, x, 0.0)
        mx = jnp.max(x, axis=0, keepdims=True)
        e = jnp.exp(x - mx)
        s = jnp.sum(e, axis=0, keepdims=True)
        inv_s = pl.reciprocal(s, approx=False)
        p = e * inv_s
        nll = (mx + jnp.log(s)) - x
        cls = jax.lax.broadcasted_iota(jnp.int32, (C, 1), 0)
        sel = t == cls
        if ignore_in_range:
            sel = jnp.logical_and(sel, t != ignore_index)
        if mask_cols:
            sel = jnp.logical_and(sel, valid)
            p = jnp.where(valid, p, 0.0)
        selm = sel.astype(jnp.float32)
        denom_ref[...] += p
        nll_ref[...] += nll * selm
        cnt_ref[...] += selm

    if ragged:
        last = pl.num_programs(1) - 1

        @pl.when(i == last)
        def _():
            body(True)

        @pl.when(i != last)
        def _():
            body(False)
    else:
        body(False)


def _run_lanes(xr, tr, ignore_index, ignore_in_range, tile_lanes):
    N, C, Mn = xr.shape
    t3 = tr.reshape(N, 1, Mn)
    cap = ((Mn + 127) // 128) * 128
    tm = max(128, min((int(tile_lanes) // 128) * 128, cap))
    num_m = -(-Mn // tm)
    ragged = (Mn % tm) != 0

    xblk = C * tm * xr.dtype.itemsize
    tblk = tm * 4
    accblk = C * tm * 4
    vmem_limit = 2 * (xblk + tblk) + 3 * accblk + 8 * C * tm * 4 + (4 << 20)
    vmem_limit = int(max(16 << 20, min(48 << 20, vmem_limit)))

    kernel = functools.partial(_wce_kernel_lanes, mn=Mn,
                               ignore_index=ignore_index,
                               ignore_in_range=ignore_in_range, ragged=ragged)
    acc_shape = jax.ShapeDtypeStruct((N, C, tm), jnp.float32)
    acc_spec = pl.BlockSpec((pl.Squeezed(), C, tm), lambda n, i: (n, 0, 0))

    denom, nll_s, cnt = pl.pallas_call(
        kernel,
        out_shape=(acc_shape, acc_shape, acc_shape),
        grid_spec=pltpu.PrefetchScalarGridSpec(
            num_scalar_prefetch=0,
            grid=(N, num_m),
            in_specs=[
                pl.BlockSpec((pl.Squeezed(), C, tm), lambda n, i: (n, 0, i)),
                pl.BlockSpec((pl.Squeezed(), 1, tm), lambda n, i: (n, 0, i)),
            ],
            out_specs=(acc_spec, acc_spec, acc_spec),
        ),
        compiler_params=pltpu.CompilerParams(
            dimension_semantics=("parallel", "arbitrary"),
            vmem_limit_bytes=vmem_limit),
    )(xr, t3)

    denom_c = jnp.sum(denom, axis=(0, 2))
    nll_c = jnp.sum(nll_s, axis=(0, 2))
    cnt_c = jnp.sum(cnt, axis=(0, 2))
    return denom_c, nll_c, cnt_c


# ---------------------------------------------------------------------------
# Public wrapper.
# ---------------------------------------------------------------------------
@functools.partial(jax.jit,
                   static_argnames=("ignore_index", "tile_rows", "tile_lanes"))
def weighted_cross_entropy_loss(x, target, weight=None, ignore_index=-1,
                                tile_rows=512, tile_lanes=16384):
    """x: (N, C, D, H, W) logits (f32 or bf16); target: (N, D, H, W) ints."""
    N, C = x.shape[0], x.shape[1]
    Mn = int(np.prod(x.shape[2:]))                 # per-batch spatial size

    # Free reshapes only -- no transpose, no pad.
    xr = x.reshape(N, C, Mn)
    # TODO(synk): accept int8/int16 targets natively in the kernel to skip this
    # cast when producers supply narrow labels (no-op for int32 inputs).
    tr = target.reshape(N, Mn).astype(jnp.int32)

    # With the default ignore_index=-1, `t == c` already excludes ignored
    # voxels; only keep the extra compare when ignore_index is a real class.
    ignore_in_range = 0 <= ignore_index < C

    if Mn % 128 == 0:
        denom_c, nll_c, cnt_c = _run_dense(xr, tr, ignore_index,
                                           ignore_in_range, tile_rows)
    else:
        denom_c, nll_c, cnt_c = _run_lanes(xr, tr, ignore_index,
                                           ignore_in_range, tile_lanes)

    m_total = jnp.float32(N * Mn)
    cw = (m_total - denom_c) / denom_c             # (1 - p).sum / p.sum
    if weight is not None:
        cw = cw * jnp.asarray(weight, jnp.float32)
    # NOTE: if every voxel is ignore_index the denominator is 0 -> NaN/Inf,
    # matching the PyTorch reference behaviour.
    return jnp.sum(cw * nll_c) / jnp.sum(cw * cnt_c)


def wce_reference(x, target, weight=None, ignore_index=-1):
    """Plain-JAX reference matching the PyTorch module."""
    C = x.shape[1]
    xf = jnp.asarray(x, jnp.float32)
    p = jax.nn.softmax(xf, axis=1)
    flat = jnp.moveaxis(p, 1, 0).reshape(C, -1)
    cw = (1.0 - flat).sum(-1) / flat.sum(-1)
    if weight is not None:
        cw = cw * jnp.asarray(weight, jnp.float32)
    logp = jax.nn.log_softmax(xf, axis=1)
    lp = jnp.moveaxis(logp, 1, 0).reshape(C, -1)
    tf = target.reshape(-1)
    valid = tf != ignore_index
    tcl = jnp.where(valid, tf, 0)
    nll = -lp[tcl, jnp.arange(tf.shape[0])]
    wt = cw[tcl] * valid.astype(jnp.float32)
    return jnp.sum(wt * nll) / jnp.sum(wt)


if __name__ == "__main__":
    key = jax.random.PRNGKey(0)
    kx, kt, km, kx2, kt2, km2, kx3, kt3, km3 = jax.random.split(key, 9)

    # case 1: default module config; Mn=512 -> sublane-dense single-tile path.
    N, C, D, H, W = 2, 4, 8, 8, 8
    x = jax.random.normal(kx, (N, C, D, H, W), jnp.float32)
    target = jax.random.randint(kt, (N, D, H, W), 0, C)
    target = jnp.where(jax.random.bernoulli(km, 0.1, (N, D, H, W)), -1, target)

    loss = weighted_cross_entropy_loss(x, target)
    jax.block_until_ready(loss)
    ref = wce_reference(x, target)
    assert np.allclose(np.asarray(loss), np.asarray(ref),
                       rtol=2e-3, atol=1e-5), (loss, ref)

    # case 2: registered per-class weight buffer.
    wbuf = jnp.array([1.0, 2.0, 0.5, 1.5], jnp.float32)
    loss_w = weighted_cross_entropy_loss(x, target, weight=wbuf)
    jax.block_until_ready(loss_w)
    ref_w = wce_reference(x, target, weight=wbuf)
    assert np.allclose(np.asarray(loss_w), np.asarray(ref_w),
                       rtol=2e-3, atol=1e-5), (loss_w, ref_w)

    # case 3: bf16 logits pass straight through (halves HBM traffic on v5e);
    # the kernel upcasts in-register, so compare against bf16-rounded values.
    loss_bf = weighted_cross_entropy_loss(x.astype(jnp.bfloat16), target)
    jax.block_until_ready(loss_bf)
    ref_bf = wce_reference(x.astype(jnp.bfloat16).astype(jnp.float32), target)
    assert np.allclose(np.asarray(loss_bf), np.asarray(ref_bf),
                       rtol=2e-3, atol=1e-5), (loss_bf, ref_bf)

    # case 4: Mn=720 not divisible by 128 -> lane-major fallback path with a
    # small tile so multi-tile accumulation + last-tile masking is exercised.
    N2, C2, D2, H2, W2 = 2, 5, 10, 9, 8
    x2 = jax.random.normal(kx2, (N2, C2, D2, H2, W2), jnp.float32)
    t2 = jax.random.randint(kt2, (N2, D2, H2, W2), 0, C2)
    t2 = jnp.where(jax.random.bernoulli(km2, 0.15, (N2, D2, H2, W2)), -1, t2)
    loss2 = weighted_cross_entropy_loss(x2, t2, tile_lanes=256)
    jax.block_until_ready(loss2)
    ref2 = wce_reference(x2, t2)
    assert np.allclose(np.asarray(loss2), np.asarray(ref2),
                       rtol=2e-3, atol=1e-5), (loss2, ref2)

    # case 5: dense multi-tile path with ragged rows, accumulator folding and
    # the N==1 outer 'parallel' split (incl. the skipped duplicate slot).
    N3, C3, D3, H3, W3 = 1, 3, 34, 32, 32          # Mn = 34816 -> 272 rows
    x3 = jax.random.normal(kx3, (N3, C3, D3, H3, W3), jnp.float32)
    t3 = jax.random.randint(kt3, (N3, D3, H3, W3), 0, C3)
    t3 = jnp.where(jax.random.bernoulli(km3, 0.1, (N3, D3, H3, W3)), -1, t3)
    loss3 = weighted_cross_entropy_loss(x3, t3, tile_rows=128)
    jax.block_until_ready(loss3)
    ref3 = wce_reference(x3, t3)
    assert np.allclose(np.asarray(loss3), np.asarray(ref3),
                       rtol=2e-3, atol=1e-5), (loss3, ref3)

    print("KERNEL_OK")
</pallas_src>

<mosaic_0001>
module attributes {stable_mosaic.version = 11 : i64} {
  func.func @_wce_kernel_dense(%arg0: i32, %arg1: i32, %arg2: i32, %arg3: memref<1x4x4x128xf32, #tpu.memory_space<vmem>>, %arg4: memref<1x4x128xi32, #tpu.memory_space<vmem>>, %arg5: memref<1x4x4x128xf32, #tpu.memory_space<vmem>>, %arg6: memref<1x4x4x128xf32, #tpu.memory_space<vmem>>, %arg7: memref<1x4x4x128xf32, #tpu.memory_space<vmem>>) attributes {dimension_semantics = [#tpu.dimension_semantics<parallel>, #tpu.dimension_semantics<parallel>, #tpu.dimension_semantics<arbitrary>], iteration_bounds = array<i64: 2, 1, 1>, scalar_prefetch = 0 : i64, scratch_operands = 0 : i64, tpu.core_type = #tpu.core_type<tc>, window_params = [{transform_indices = @transform_0, window_bounds = array<i64: 1, 4, 4, 128>}, {transform_indices = @transform_1, window_bounds = array<i64: 1, 4, 128>}, {transform_indices = @transform_2, window_bounds = array<i64: 1, 4, 4, 128>}, {transform_indices = @transform_3, window_bounds = array<i64: 1, 4, 4, 128>}, {transform_indices = @transform_4, window_bounds = array<i64: 1, 4, 4, 128>}]} {
    %c0_i32 = arith.constant 0 : i32
    %0 = arith.cmpi eq, %arg2, %c0_i32 : i32
    %1 = arith.extui %0 : i1 to i32
    %c0_i32_0 = arith.constant 0 : i32
    %2 = arith.cmpi ne, %1, %c0_i32_0 : i32
    scf.if %2 {
      %cst = arith.constant 0.000000e+00 : f32
      %130 = vector.broadcast %cst : f32 to vector<4x4x128xf32>
      %c0_113 = arith.constant 0 : index
      %c0_114 = arith.constant 0 : index
      %c0_115 = arith.constant 0 : index
      %c0_116 = arith.constant 0 : index
      %131 = vector.load %arg5[%c0_113, %c0_114, %c0_115, %c0_116] : memref<1x4x4x128xf32, #tpu.memory_space<vmem>>, vector<1x4x4x128xf32>
      %132 = vector.shape_cast %131 : vector<1x4x4x128xf32> to vector<4x4x128xf32>
      %133 = vector.shape_cast %130 : vector<4x4x128xf32> to vector<1x4x4x128xf32>
      tpu.vector_store %arg5[%c0_113, %c0_114, %c0_115, %c0_116], %133 {strides = array<i32>} : memref<1x4x4x128xf32, #tpu.memory_space<vmem>>, vector<1x4x4x128xf32>,
      %cst_117 = arith.constant 0.000000e+00 : f32
      %134 = vector.broadcast %cst_117 : f32 to vector<4x4x128xf32>
      %c0_118 = arith.constant 0 : index
      %c0_119 = arith.constant 0 : index
      %c0_120 = arith.constant 0 : index
      %c0_121 = arith.constant 0 : index
      %135 = vector.load %arg6[%c0_118, %c0_119, %c0_120, %c0_121] : memref<1x4x4x128xf32, #tpu.memory_space<vmem>>, vector<1x4x4x128xf32>
      %136 = vector.shape_cast %135 : vector<1x4x4x128xf32> to vector<4x4x128xf32>
      %137 = vector.shape_cast %134 : vector<4x4x128xf32> to vector<1x4x4x128xf32>
      tpu.vector_store %arg6[%c0_118, %c0_119, %c0_120, %c0_121], %137 {strides = array<i32>} : memref<1x4x4x128xf32, #tpu.memory_space<vmem>>, vector<1x4x4x128xf32>,
      %cst_122 = arith.constant 0.000000e+00 : f32
      %138 = vector.broadcast %cst_122 : f32 to vector<4x4x128xf32>
      %c0_123 = arith.constant 0 : index
      %c0_124 = arith.constant 0 : index
      %c0_125 = arith.constant 0 : index
      %c0_126 = arith.constant 0 : index
      %139 = vector.load %arg7[%c0_123, %c0_124, %c0_125, %c0_126] : memref<1x4x4x128xf32, #tpu.memory_space<vmem>>, vector<1x4x4x128xf32>
      %140 = vector.shape_cast %139 : vector<1x4x4x128xf32> to vector<4x4x128xf32>
      %141 = vector.shape_cast %138 : vector<4x4x128xf32> to vector<1x4x4x128xf32>
      tpu.vector_store %arg7[%c0_123, %c0_124, %c0_125, %c0_126], %141 {strides = array<i32>} : memref<1x4x4x128xf32, #tpu.memory_space<vmem>>, vector<1x4x4x128xf32>,
    } else {
    }
    %c0 = arith.constant 0 : index
    %c0_1 = arith.constant 0 : index
    %c0_2 = arith.constant 0 : index
    %3 = vector.load %arg4[%c0, %c0_1, %c0_2] : memref<1x4x128xi32, #tpu.memory_space<vmem>>, vector<1x4x128xi32>
    %4 = vector.shape_cast %3 : vector<1x4x128xi32> to vector<4x128xi32>
    %c0_3 = arith.constant 0 : index
    %c0_4 = arith.constant 0 : index
    %c0_5 = arith.constant 0 : index
    %c0_6 = arith.constant 0 : index
    %5 = vector.load %arg3[%c0_3, %c0_4, %c0_5, %c0_6] : memref<1x4x4x128xf32, #tpu.memory_space<vmem>>, vector<1x1x4x128xf32>
    %6 = vector.shape_cast %5 : vector<1x1x4x128xf32> to vector<4x128xf32>
    %c0_7 = arith.constant 0 : index
    %c1 = arith.constant 1 : index
    %c0_8 = arith.constant 0 : index
    %c0_9 = arith.constant 0 : index
    %7 = vector.load %arg3[%c0_7, %c1, %c0_8, %c0_9] : memref<1x4x4x128xf32, #tpu.memory_space<vmem>>, vector<1x1x4x128xf32>
    %8 = vector.shape_cast %7 : vector<1x1x4x128xf32> to vector<4x128xf32>
    %c0_10 = arith.constant 0 : index
    %c2 = arith.constant 2 : index
    %c0_11 = arith.constant 0 : index
    %c0_12 = arith.constant 0 : index
    %9 = vector.load %arg3[%c0_10, %c2, %c0_11, %c0_12] : memref<1x4x4x128xf32, #tpu.memory_space<vmem>>, vector<1x1x4x128xf32>
    %10 = vector.shape_cast %9 : vector<1x1x4x128xf32> to vector<4x128xf32>
    %c0_13 = arith.constant 0 : index
    %c3 = arith.constant 3 : index
    %c0_14 = arith.constant 0 : index
    %c0_15 = arith.constant 0 : index
    %11 = vector.load %arg3[%c0_13, %c3, %c0_14, %c0_15] : memref<1x4x4x128xf32, #tpu.memory_space<vmem>>, vector<1x1x4x128xf32>
    %12 = vector.shape_cast %11 : vector<1x1x4x128xf32> to vector<4x128xf32>
    %13 = arith.maximumf %6, %8 : vector<4x128xf32>
    %14 = arith.maximumf %13, %10 : vector<4x128xf32>
    %15 = arith.maximumf %14, %12 : vector<4x128xf32>
    %16 = arith.subf %6, %15 : vector<4x128xf32>
    %17 = math.exp %16 : vector<4x128xf32>
    %18 = arith.subf %8, %15 : vector<4x128xf32>
    %19 = math.exp %18 : vector<4x128xf32>
    %20 = arith.subf %10, %15 : vector<4x128xf32>
    %21 = math.exp %20 : vector<4x128xf32>
    %22 = arith.subf %12, %15 : vector<4x128xf32>
    %23 = math.exp %22 : vector<4x128xf32>
    %24 = arith.addf %17, %19 : vector<4x128xf32>
    %25 = arith.addf %24, %21 : vector<4x128xf32>
    %26 = arith.addf %25, %23 : vector<4x128xf32>
    %27 = tpu.reciprocal %26 : vector<4x128xf32> -> vector<4x128xf32>
    %28 = math.log %26 : vector<4x128xf32>
    %29 = arith.addf %15, %28 : vector<4x128xf32>
    %30 = arith.mulf %17, %27 : vector<4x128xf32>
    %c0_i32_16 = arith.constant 0 : i32
    %31 = vector.broadcast %c0_i32_16 : i32 to vector<4x128xi32>
    %32 = arith.cmpi eq, %4, %31 : vector<4x128xi32>
    %33 = arith.extui %32 : vector<4x128xi1> to vector<4x128xi32>
    %34 = arith.sitofp %33 : vector<4x128xi32> to vector<4x128xf32>
    %c0_17 = arith.constant 0 : index
    %c0_18 = arith.constant 0 : index
    %c0_19 = arith.constant 0 : index
    %c0_20 = arith.constant 0 : index
    %35 = vector.load %arg5[%c0_17, %c0_18, %c0_19, %c0_20] : memref<1x4x4x128xf32, #tpu.memory_space<vmem>>, vector<1x1x4x128xf32>
    %36 = vector.shape_cast %35 : vector<1x1x4x128xf32> to vector<4x128xf32>
    %37 = arith.addf %36, %30 : vector<4x128xf32>
    %c0_21 = arith.constant 0 : index
    %c0_22 = arith.constant 0 : index
    %c0_23 = arith.constant 0 : index
    %c0_24 = arith.constant 0 : index
    %38 = vector.load %arg5[%c0_21, %c0_22, %c0_23, %c0_24] : memref<1x4x4x128xf32, #tpu.memory_space<vmem>>, vector<1x1x4x128xf32>
    %39 = vector.shape_cast %38 : vector<1x1x4x128xf32> to vector<4x128xf32>
    %40 = vector.shape_cast %37 : vector<4x128xf32> to vector<1x1x4x128xf32>
    tpu.vector_store %arg5[%c0_21, %c0_22, %c0_23, %c0_24], %40 {strides = array<i32>} : memref<1x4x4x128xf32, #tpu.memory_space<vmem>>, vector<1x1x4x128xf32>,
    %c0_25 = arith.constant 0 : index
    %c0_26 = arith.constant 0 : index
    %c0_27 = arith.constant 0 : index
    %c0_28 = arith.constant 0 : index
    %41 = vector.load %arg6[%c0_25, %c0_26, %c0_27, %c0_28] : memref<1x4x4x128xf32, #tpu.memory_space<vmem>>, vector<1x1x4x128xf32>
    %42 = vector.shape_cast %41 : vector<1x1x4x128xf32> to vector<4x128xf32>
    %43 = arith.subf %29, %6 : vector<4x128xf32>
    %44 = arith.mulf %34, %43 : vector<4x128xf32>
    %45 = arith.addf %42, %44 : vector<4x128xf32>
    %c0_29 = arith.constant 0 : index
    %c0_30 = arith.constant 0 : index
    %c0_31 = arith.constant 0 : index
    %c0_32 = arith.constant 0 : index
    %46 = vector.load %arg6[%c0_29, %c0_30, %c0_31, %c0_32] : memref<1x4x4x128xf32, #tpu.memory_space<vmem>>, vector<1x1x4x128xf32>
    %47 = vector.shape_cast %46 : vector<1x1x4x128xf32> to vector<4x128xf32>
    %48 = vector.shape_cast %45 : vector<4x128xf32> to vector<1x1x4x128xf32>
    tpu.vector_store %arg6[%c0_29, %c0_30, %c0_31, %c0_32], %48 {strides = array<i32>} : memref<1x4x4x128xf32, #tpu.memory_space<vmem>>, vector<1x1x4x128xf32>,
    %c0_33 = arith.constant 0 : index
    %c0_34 = arith.constant 0 : index
    %c0_35 = arith.constant 0 : index
    %c0_36 = arith.constant 0 : index
    %49 = vector.load %arg7[%c0_33, %c0_34, %c0_35, %c0_36] : memref<1x4x4x128xf32, #tpu.memory_space<vmem>>, vector<1x1x4x128xf32>
    %50 = vector.shape_cast %49 : vector<1x1x4x128xf32> to vector<4x128xf32>
    %51 = arith.addf %50, %34 : vector<4x128xf32>
    %c0_37 = arith.constant 0 : index
    %c0_38 = arith.constant 0 : index
    %c0_39 = arith.constant 0 : index
    %c0_40 = arith.constant 0 : index
    %52 = vector.load %arg7[%c0_37, %c0_38, %c0_39, %c0_40] : memref<1x4x4x128xf32, #tpu.memory_space<vmem>>, vector<1x1x4x128xf32>
    %53 = vector.shape_cast %52 : vector<1x1x4x128xf32> to vector<4x128xf32>
    %54 = vector.shape_cast %51 : vector<4x128xf32> to vector<1x1x4x128xf32>
    tpu.vector_store %arg7[%c0_37, %c0_38, %c0_39, %c0_40], %54 {strides = array<i32>} : memref<1x4x4x128xf32, #tpu.memory_space<vmem>>, vector<1x1x4x128xf32>,
    %55 = arith.mulf %19, %27 : vector<4x128xf32>
    %c1_i32 = arith.constant 1 : i32
    %56 = vector.broadcast %c1_i32 : i32 to vector<4x128xi32>
    %57 = arith.cmpi eq, %4, %56 : vector<4x128xi32>
    %58 = arith.extui %57 : vector<4x128xi1> to vector<4x128xi32>
    %59 = arith.sitofp %58 : vector<4x128xi32> to vector<4x128xf32>
    %c0_41 = arith.constant 0 : index
    %c1_42 = arith.constant 1 : index
    %c0_43 = arith.constant 0 : index
    %c0_44 = arith.constant 0 : index
    %60 = vector.load %arg5[%c0_41, %c1_42, %c0_43, %c0_44] : memref<1x4x4x128xf32, #tpu.memory_space<vmem>>, vector<1x1x4x128xf32>
    %61 = vector.shape_cast %60 : vector<1x1x4x128xf32> to vector<4x128xf32>
    %62 = arith.addf %61, %55 : vector<4x128xf32>
    %c0_45 = arith.constant 0 : index
    %c1_46 = arith.constant 1 : index
    %c0_47 = arith.constant 0 : index
    %c0_48 = arith.constant 0 : index
    %63 = vector.load %arg5[%c0_45, %c1_46, %c0_47, %c0_48] : memref<1x4x4x128xf32, #tpu.memory_space<vmem>>, vector<1x1x4x128xf32>
    %64 = vector.shape_cast %63 : vector<1x1x4x128xf32> to vector<4x128xf32>
    %65 = vector.shape_cast %62 : vector<4x128xf32> to vector<1x1x4x128xf32>
    tpu.vector_store %arg5[%c0_45, %c1_46, %c0_47, %c0_48], %65 {strides = array<i32>} : memref<1x4x4x128xf32, #tpu.memory_space<vmem>>, vector<1x1x4x128xf32>,
    %c0_49 = arith.constant 0 : index
    %c1_50 = arith.constant 1 : index
    %c0_51 = arith.constant 0 : index
    %c0_52 = arith.constant 0 : index
    %66 = vector.load %arg6[%c0_49, %c1_50, %c0_51, %c0_52] : memref<1x4x4x128xf32, #tpu.memory_space<vmem>>, vector<1x1x4x128xf32>
    %67 = vector.shape_cast %66 : vector<1x1x4x128xf32> to vector<4x128xf32>
    %68 = arith.subf %29, %8 : vector<4x128xf32>
    %69 = arith.mulf %59, %68 : vector<4x128xf32>
    %70 = arith.addf %67, %69 : vector<4x128xf32>
    %c0_53 = arith.constant 0 : index
    %c1_54 = arith.constant 1 : index
    %c0_55 = arith.constant 0 : index
    %c0_56 = arith.constant 0 : index
    %71 = vector.load %arg6[%c0_53, %c1_54, %c0_55, %c0_56] : memref<1x4x4x128xf32, #tpu.memory_space<vmem>>, vector<1x1x4x128xf32>
    %72 = vector.shape_cast %71 : vector<1x1x4x128xf32> to vector<4x128xf32>
    %73 = vector.shape_cast %70 : vector<4x128xf32> to vector<1x1x4x128xf32>
    tpu.vector_store %arg6[%c0_53, %c1_54, %c0_55, %c0_56], %73 {strides = array<i32>} : memref<1x4x4x128xf32, #tpu.memory_space<vmem>>, vector<1x1x4x128xf32>,
    %c0_57 = arith.constant 0 : index
    %c1_58 = arith.constant 1 : index
    %c0_59 = arith.constant 0 : index
    %c0_60 = arith.constant 0 : index
    %74 = vector.load %arg7[%c0_57, %c1_58, %c0_59, %c0_60] : memref<1x4x4x128xf32, #tpu.memory_space<vmem>>, vector<1x1x4x128xf32>
    %75 = vector.shape_cast %74 : vector<1x1x4x128xf32> to vector<4x128xf32>
    %76 = arith.addf %75, %59 : vector<4x128xf32>
    %c0_61 = arith.constant 0 : index
    %c1_62 = arith.constant 1 : index
    %c0_63 = arith.constant 0 : index
    %c0_64 = arith.constant 0 : index
    %77 = vector.load %arg7[%c0_61, %c1_62, %c0_63, %c0_64] : memref<1x4x4x128xf32, #tpu.memory_space<vmem>>, vector<1x1x4x128xf32>
    %78 = vector.shape_cast %77 : vector<1x1x4x128xf32> to vector<4x128xf32>
    %79 = vector.shape_cast %76 : vector<4x128xf32> to vector<1x1x4x128xf32>
    tpu.vector_store %arg7[%c0_61, %c1_62, %c0_63, %c0_64], %79 {strides = array<i32>} : memref<1x4x4x128xf32, #tpu.memory_space<vmem>>, vector<1x1x4x128xf32>,
    %80 = arith.mulf %21, %27 : vector<4x128xf32>
    %c2_i32 = arith.constant 2 : i32
    %81 = vector.broadcast %c2_i32 : i32 to vector<4x128xi32>
    %82 = arith.cmpi eq, %4, %81 : vector<4x128xi32>
    %83 = arith.extui %82 : vector<4x128xi1> to vector<4x128xi32>
    %84 = arith.sitofp %83 : vector<4x128xi32> to vector<4x128xf32>
    %c0_65 = arith.constant 0 : index
    %c2_66 = arith.constant 2 : index
    %c0_67 = arith.constant 0 : index
    %c0_68 = arith.constant 0 : index
    %85 = vector.load %arg5[%c0_65, %c2_66, %c0_67, %c0_68] : memref<1x4x4x128xf32, #tpu.memory_space<vmem>>, vector<1x1x4x128xf32>
    %86 = vector.shape_cast %85 : vector<1x1x4x128xf32> to vector<4x128xf32>
    %87 = arith.addf %86, %80 : vector<4x128xf32>
    %c0_69 = arith.constant 0 : index
    %c2_70 = arith.constant 2 : index
    %c0_71 = arith.constant 0 : index
    %c0_72 = arith.constant 0 : index
    %88 = vector.load %arg5[%c0_69, %c2_70, %c0_71, %c0_72] : memref<1x4x4x128xf32, #tpu.memory_space<vmem>>, vector<1x1x4x128xf32>
    %89 = vector.shape_cast %88 : vector<1x1x4x128xf32> to vector<4x128xf32>
    %90 = vector.shape_cast %87 : vector<4x128xf32> to vector<1x1x4x128xf32>
    tpu.vector_store %arg5[%c0_69, %c2_70, %c0_71, %c0_72], %90 {strides = array<i32>} : memref<1x4x4x128xf32, #tpu.memory_space<vmem>>, vector<1x1x4x128xf32>,
    %c0_73 = arith.constant 0 : index
    %c2_74 = arith.constant 2 : index
    %c0_75 = arith.constant 0 : index
    %c0_76 = arith.constant 0 : index
    %91 = vector.load %arg6[%c0_73, %c2_74, %c0_75, %c0_76] : memref<1x4x4x128xf32, #tpu.memory_space<vmem>>, vector<1x1x4x128xf32>
    %92 = vector.shape_cast %91 : vector<1x1x4x128xf32> to vector<4x128xf32>
    %93 = arith.subf %29, %10 : vector<4x128xf32>
    %94 = arith.mulf %84, %93 : vector<4x128xf32>
    %95 = arith.addf %92, %94 : vector<4x128xf32>
    %c0_77 = arith.constant 0 : index
    %c2_78 = arith.constant 2 : index
    %c0_79 = arith.constant 0 : index
    %c0_80 = arith.constant 0 : index
    %96 = vector.load %arg6[%c0_77, %c2_78, %c0_79, %c0_80] : memref<1x4x4x128xf32, #tpu.memory_space<vmem>>, vector<1x1x4x128xf32>
    %97 = vector.shape_cast %96 : vector<1x1x4x128xf32> to vector<4x128xf32>
    %98 = vector.shape_cast %95 : vector<4x128xf32> to vector<1x1x4x128xf32>
    tpu.vector_store %arg6[%c0_77, %c2_78, %c0_79, %c0_80], %98 {strides = array<i32>} : memref<1x4x4x128xf32, #tpu.memory_space<vmem>>, vector<1x1x4x128xf32>,
    %c0_81 = arith.constant 0 : index
    %c2_82 = arith.constant 2 : index
    %c0_83 = arith.constant 0 : index
    %c0_84 = arith.constant 0 : index
    %99 = vector.load %arg7[%c0_81, %c2_82, %c0_83, %c0_84] : memref<1x4x4x128xf32, #tpu.memory_space<vmem>>, vector<1x1x4x128xf32>
    %100 = vector.shape_cast %99 : vector<1x1x4x128xf32> to vector<4x128xf32>
    %101 = arith.addf %100, %84 : vector<4x128xf32>
    %c0_85 = arith.constant 0 : index
    %c2_86 = arith.constant 2 : index
    %c0_87 = arith.constant 0 : index
    %c0_88 = arith.constant 0 : index
    %102 = vector.load %arg7[%c0_85, %c2_86, %c0_87, %c0_88] : memref<1x4x4x128xf32, #tpu.memory_space<vmem>>, vector<1x1x4x128xf32>
    %103 = vector.shape_cast %102 : vector<1x1x4x128xf32> to vector<4x128xf32>
    %104 = vector.shape_cast %101 : vector<4x128xf32> to vector<1x1x4x128xf32>
    tpu.vector_store %arg7[%c0_85, %c2_86, %c0_87, %c0_88], %104 {strides = array<i32>} : memref<1x4x4x128xf32, #tpu.memory_space<vmem>>, vector<1x1x4x128xf32>,
    %105 = arith.mulf %23, %27 : vector<4x128xf32>
    %c3_i32 = arith.constant 3 : i32
    %106 = vector.broadcast %c3_i32 : i32 to vector<4x128xi32>
    %107 = arith.cmpi eq, %4, %106 : vector<4x128xi32>
    %108 = arith.extui %107 : vector<4x128xi1> to vector<4x128xi32>
    %109 = arith.sitofp %108 : vector<4x128xi32> to vector<4x128xf32>
    %c0_89 = arith.constant 0 : index
    %c3_90 = arith.constant 3 : index
    %c0_91 = arith.constant 0 : index
    %c0_92 = arith.constant 0 : index
    %110 = vector.load %arg5[%c0_89, %c3_90, %c0_91, %c0_92] : memref<1x4x4x128xf32, #tpu.memory_space<vmem>>, vector<1x1x4x128xf32>
    %111 = vector.shape_cast %110 : vector<1x1x4x128xf32> to vector<4x128xf32>
    %112 = arith.addf %111, %105 : vector<4x128xf32>
    %c0_93 = arith.constant 0 : index
    %c3_94 = arith.constant 3 : index
    %c0_95 = arith.constant 0 : index
    %c0_96 = arith.constant 0 : index
    %113 = vector.load %arg5[%c0_93, %c3_94, %c0_95, %c0_96] : memref<1x4x4x128xf32, #tpu.memory_space<vmem>>, vector<1x1x4x128xf32>
    %114 = vector.shape_cast %113 : vector<1x1x4x128xf32> to vector<4x128xf32>
    %115 = vector.shape_cast %112 : vector<4x128xf32> to vector<1x1x4x128xf32>
    tpu.vector_store %arg5[%c0_93, %c3_94, %c0_95, %c0_96], %115 {strides = array<i32>} : memref<1x4x4x128xf32, #tpu.memory_space<vmem>>, vector<1x1x4x128xf32>,
    %c0_97 = arith.constant 0 : index
    %c3_98 = arith.constant 3 : index
    %c0_99 = arith.constant 0 : index
    %c0_100 = arith.constant 0 : index
    %116 = vector.load %arg6[%c0_97, %c3_98, %c0_99, %c0_100] : memref<1x4x4x128xf32, #tpu.memory_space<vmem>>, vector<1x1x4x128xf32>
    %117 = vector.shape_cast %116 : vector<1x1x4x128xf32> to vector<4x128xf32>
    %118 = arith.subf %29, %12 : vector<4x128xf32>
    %119 = arith.mulf %109, %118 : vector<4x128xf32>
    %120 = arith.addf %117, %119 : vector<4x128xf32>
    %c0_101 = arith.constant 0 : index
    %c3_102 = arith.constant 3 : index
    %c0_103 = arith.constant 0 : index
    %c0_104 = arith.constant 0 : index
    %121 = vector.load %arg6[%c0_101, %c3_102, %c0_103, %c0_104] : memref<1x4x4x128xf32, #tpu.memory_space<vmem>>, vector<1x1x4x128xf32>
    %122 = vector.shape_cast %121 : vector<1x1x4x128xf32> to vector<4x128xf32>
    %123 = vector.shape_cast %120 : vector<4x128xf32> to vector<1x1x4x128xf32>
    tpu.vector_store %arg6[%c0_101, %c3_102, %c0_103, %c0_104], %123 {strides = array<i32>} : memref<1x4x4x128xf32, #tpu.memory_space<vmem>>, vector<1x1x4x128xf32>,
    %c0_105 = arith.constant 0 : index
    %c3_106 = arith.constant 3 : index
    %c0_107 = arith.constant 0 : index
    %c0_108 = arith.constant 0 : index
    %124 = vector.load %arg7[%c0_105, %c3_106, %c0_107, %c0_108] : memref<1x4x4x128xf32, #tpu.memory_space<vmem>>, vector<1x1x4x128xf32>
    %125 = vector.shape_cast %124 : vector<1x1x4x128xf32> to vector<4x128xf32>
    %126 = arith.addf %125, %109 : vector<4x128xf32>
    %c0_109 = arith.constant 0 : index
    %c3_110 = arith.constant 3 : index
    %c0_111 = arith.constant 0 : index
    %c0_112 = arith.constant 0 : index
    %127 = vector.load %arg7[%c0_109, %c3_110, %c0_111, %c0_112] : memref<1x4x4x128xf32, #tpu.memory_space<vmem>>, vector<1x1x4x128xf32>
    %128 = vector.shape_cast %127 : vector<1x1x4x128xf32> to vector<4x128xf32>
    %129 = vector.shape_cast %126 : vector<4x128xf32> to vector<1x1x4x128xf32>
    tpu.vector_store %arg7[%c0_109, %c3_110, %c0_111, %c0_112], %129 {strides = array<i32>} : memref<1x4x4x128xf32, #tpu.memory_space<vmem>>, vector<1x1x4x128xf32>,
    return
  }
  func.func @transform_0(%arg0: i32, %arg1: i32, %arg2: i32) -> (i32, i32, i32, i32) {
    %c1_i32 = arith.constant 1 : i32
    %0 = arith.muli %arg1, %c1_i32 : i32
    %1 = arith.addi %0, %arg2 : i32
    %c0_i32 = arith.constant 0 : i32
    %c0_i32_0 = arith.constant 0 : i32
    %c0_i32_1 = arith.constant 0 : i32
    return %arg0, %c0_i32, %1, %c0_i32_0 : i32, i32, i32, i32
  }
  func.func @transform_1(%arg0: i32, %arg1: i32, %arg2: i32) -> (i32, i32, i32) {
    %c1_i32 = arith.constant 1 : i32
    %0 = arith.muli %arg1, %c1_i32 : i32
    %1 = arith.addi %0, %arg2 : i32
    %c0_i32 = arith.constant 0 : i32
    %c0_i32_0 = arith.constant 0 : i32
    return %arg0, %1, %c0_i32 : i32, i32, i32
  }
  func.func @transform_2(%arg0: i32, %arg1: i32, %arg2: i32) -> (i32, i32, i32, i32) {
    %c1_i32 = arith.constant 1 : i32
    %0 = arith.muli %arg0, %c1_i32 : i32
    %1 = arith.addi %0, %arg1 : i32
    %c0_i32 = arith.constant 0 : i32
    %c0_i32_0 = arith.constant 0 : i32
    %c0_i32_1 = arith.constant 0 : i32
    %c0_i32_2 = arith.constant 0 : i32
    return %1, %c0_i32, %c0_i32_0, %c0_i32_1 : i32, i32, i32, i32
  }
  func.func @transform_3(%arg0: i32, %arg1: i32, %arg2: i32) -> (i32, i32, i32, i32) {
    %c1_i32 = arith.constant 1 : i32
    %0 = arith.muli %arg0, %c1_i32 : i32
    %1 = arith.addi %0, %arg1 : i32
    %c0_i32 = arith.constant 0 : i32
    %c0_i32_0 = arith.constant 0 : i32
    %c0_i32_1 = arith.constant 0 : i32
    %c0_i32_2 = arith.constant 0 : i32
    return %1, %c0_i32, %c0_i32_0, %c0_i32_1 : i32, i32, i32, i32
  }
  func.func @transform_4(%arg0: i32, %arg1: i32, %arg2: i32) -> (i32, i32, i32, i32) {
    %c1_i32 = arith.constant 1 : i32
    %0 = arith.muli %arg0, %c1_i32 : i32
    %1 = arith.addi %0, %arg1 : i32
    %c0_i32 = arith.constant 0 : i32
    %c0_i32_0 = arith.constant 0 : i32
    %c0_i32_1 = arith.constant 0 : i32
    %c0_i32_2 = arith.constant 0 : i32
    return %1, %c0_i32, %c0_i32_0, %c0_i32_1 : i32, i32, i32, i32
  }
}

</mosaic_0001>

<llo_original>
// kernel: weighted_cross_entropy_loss.1
$region0: #{weighted_cross_entropy_loss.1}
  #allocation0 [shape = 'u32[]', space=smem, size = 0x4, offset = 0x4, fixed_abs, tag = 'smem constant byte address 0x4 - core index']
  #allocation1 [shape = 'u32[72,128]{1,0:T(1,128)}', space=vmem, size = 0x9000, scoped, tag = 'internal scratch']
  %s0 = inlined_call_operand.vmem [shape: f32[2,4,4,128], index: 0, kind: input, shape index: {}]
  %s1 = inlined_call_operand.vmem [shape: s32[2,4,128], index: 1, kind: input, shape index: {}]
  %s2 = inlined_call_operand.vmem [shape: f32[2,4,4,128], index: 2, kind: output, shape index: {0}]
  %s3 = inlined_call_operand.vmem [shape: f32[2,4,4,128], index: 3, kind: output, shape index: {1}]
  %s4 = inlined_call_operand.vmem [shape: f32[2,4,4,128], index: 4, kind: output, shape index: {2}]
  %5 = xla_tuple %s2, %s3, %s4
  %s6 = sld [smem:[#allocation0]]
  $region61: #{weighted_cross_entropy_loss.1} parent=0
    _
  %s8 = ssub.s32 1, %s6
  %s9 = scalar_select 0, %s8, %s6
  loop: start=0, step=1, limit=4
  $region2: #{weighted_cross_entropy_loss.1} parent=0 // loop_pre_header
    _
  $region3: #{weighted_cross_entropy_loss.1} parent=0 // loop_header
    %s11 = sphi 0, %s15
    %p12 = scmp.ge.s32.totalorder %s11, 4
    %s18 = sphi 0, %s37
    %s19 = sphi 0, %s33
    %s20 = sphi 0, %s29
    %s21 = sphi 0, %s18
    %s22 = sphi 0, %s19
    %s23 = sphi 0, %s20
    %s24 = sphi 0, %s21
    %s25 = sphi 0, %s22
    %s26 = sphi 0, %s23
    %s44 = sphi 0, %s46
    %s47 = sphi 0, %s44
    %s48 = sphi 0, %s47
    %s64 = sphi 0, %s48
    %s74 = sphi 0, %s76
    %s77 = sphi 0, %s74
    %s78 = sphi 0, %s77
    %s94 = sphi 0, %s78
    %s102 = sphi 0, %s104
    %s105 = sphi 0, %s102
    %s106 = sphi 0, %s105
    %s122 = sphi 0, %s106
    %s130 = sphi 0, %s132
    %s133 = sphi 0, %s130
    %s134 = sphi 0, %s133
    %s150 = sphi 0, %s134
    %s158 = sphi 0, %s160
    %s161 = sphi 0, %s158
    %s162 = sphi 0, %s161
    %s178 = sphi 0, %s162
  $region4: #{weighted_cross_entropy_loss.1} parent=0 // loop_header_branch
    %14 = sbr.rel (%p12) target = $region8
  $region5: #{weighted_cross_entropy_loss.1} parent=0 // loop_body
    %s16 = ssub.s32 %s11, 1
    %s17 = ssub.s32 %s11, 2
    %s27 = sadd.s32 1, %s20
    %p28 = scmp.ge.s32.totalorder %s27, 1
    %s29 = scalar_select %p28, 0, %s27
    %s30 = sadd.s32 1, %s19
    %s31 = scalar_select %p28, %s30, %s19
    %p32 = scmp.ge.s32.totalorder %s31, 1
    %s33 = scalar_select %p32, 0, %s31
    %s34 = sadd.s32 1, %s18
    %s35 = scalar_select %p32, %s34, %s18
    %p36 = scmp.ge.s32.totalorder %s35, 2
    %s37 = scalar_select %p36, 0, %s35
    %s38 = sadd.s32 %s19, %s20
    %s39 = sadd.s32 %s33, %s29
    %s40 = ssub.s32 %s18, %s37
    %s41 = ssub.s32 %s38, %s39
    %s42 = sor.u32 %s40, %s41
    %p43 = scmp.eq.s32.totalorder %s42, 0
    %s45 = sadd.s32 %s44, 1
    %s46 = scalar_select %p43, %s44, %s45
    %p49 = pneg %p43
    %p50 = scmp.eq.s32.totalorder %s11, 1
    %p51 = por %p49, %p50
    %p52 = scmp.ne.s32.totalorder %s44, %s47
    %p53 = scmp.eq.s32.totalorder %s11, 0
    %p54 = por %p52, %p53
    %p55 = scmp.ne.s32.totalorder %s44, %s47
    %p56 = scmp.eq.s32.totalorder %s16, 1
    %p57 = por %p55, %p56
    %p58 = scmp.ne.s32.totalorder %s47, %s48
    %p59 = scmp.eq.s32.totalorder %s16, 0
    %p60 = por %p58, %p59
    %p61 = scmp.ne.s32.totalorder %s47, %s48
    %p62 = scmp.eq.s32.totalorder %s17, 1
    %p63 = por %p61, %p62
    %p65 = scmp.ne.s32.totalorder %s48, %s64
    %p66 = scmp.eq.s32.totalorder %s17, 0
    %p67 = por %p65, %p66
    %s68 = sadd.s32 %s19, %s20
    %s69 = sadd.s32 %s33, %s29
    %s70 = ssub.s32 %s18, %s37
    %s71 = ssub.s32 %s68, %s69
    %s72 = sor.u32 %s70, %s71
    %p73 = scmp.eq.s32.totalorder %s72, 0
    %s75 = sadd.s32 %s74, 1
    %s76 = scalar_select %p73, %s74, %s75
    %p79 = pneg %p73
    %p80 = scmp.eq.s32.totalorder %s11, 1
    %p81 = por %p79, %p80
    %p82 = scmp.ne.s32.totalorder %s74, %s77
    %p83 = scmp.eq.s32.totalorder %s11, 0
    %p84 = por %p82, %p83
    %p85 = scmp.ne.s32.totalorder %s74, %s77
    %p86 = scmp.eq.s32.totalorder %s16, 1
    %p87 = por %p85, %p86
    %p88 = scmp.ne.s32.totalorder %s77, %s78
    %p89 = scmp.eq.s32.totalorder %s16, 0
    %p90 = por %p88, %p89
    %p91 = scmp.ne.s32.totalorder %s77, %s78
    %p92 = scmp.eq.s32.totalorder %s17, 1
    %p93 = por %p91, %p92
    %p95 = scmp.ne.s32.totalorder %s78, %s94
    %p96 = scmp.eq.s32.totalorder %s17, 0
    %p97 = por %p95, %p96
    %s98 = sadd.s32 %s18, %s19
    %s99 = sadd.s32 %s37, %s33
    %s100 = ssub.s32 %s98, %s99
    %p101 = scmp.eq.s32.totalorder %s100, 0
    %s103 = sadd.s32 %s102, 1
    %s104 = scalar_select %p101, %s102, %s103
    %p107 = pneg %p101
    %p108 = scmp.eq.s32.totalorder %s11, 1
    %p109 = por %p107, %p108
    %p110 = scmp.ne.s32.totalorder %s102, %s105
    %p111 = scmp.eq.s32.totalorder %s11, 0
    %p112 = por %p110, %p111
    %p113 = scmp.ne.s32.totalorder %s102, %s105
    %p114 = scmp.eq.s32.totalorder %s16, 1
    %p115 = por %p113, %p114
    %p116 = scmp.ne.s32.totalorder %s105, %s106
    %p117 = scmp.eq.s32.totalorder %s16, 0
    %p118 = por %p116, %p117
    %p119 = scmp.ne.s32.totalorder %s105, %s106
    %p120 = scmp.eq.s32.totalorder %s17, 1
    %p121 = por %p119, %p120
    %p123 = scmp.ne.s32.totalorder %s106, %s122
    %p124 = scmp.eq.s32.totalorder %s17, 0
    %p125 = por %p123, %p124
    %s126 = sadd.s32 %s18, %s19
    %s127 = sadd.s32 %s37, %s33
    %s128 = ssub.s32 %s126, %s127
    %p129 = scmp.eq.s32.totalorder %s128, 0
    %s131 = sadd.s32 %s130, 1
    %s132 = scalar_select %p129, %s130, %s131
    %p135 = pneg %p129
    %p136 = scmp.eq.s32.totalorder %s11, 1
    %p137 = por %p135, %p136
    %p138 = scmp.ne.s32.totalorder %s130, %s133
    %p139 = scmp.eq.s32.totalorder %s11, 0
    %p140 = por %p138, %p139
    %p141 = scmp.ne.s32.totalorder %s130, %s133
    %p142 = scmp.eq.s32.totalorder %s16, 1
    %p143 = por %p141, %p142
    %p144 = scmp.ne.s32.totalorder %s133, %s134
    %p145 = scmp.eq.s32.totalorder %s16, 0
    %p146 = por %p144, %p145
    %p147 = scmp.ne.s32.totalorder %s133, %s134
    %p148 = scmp.eq.s32.totalorder %s17, 1
    %p149 = por %p147, %p148
    %p151 = scmp.ne.s32.totalorder %s134, %s150
    %p152 = scmp.eq.s32.totalorder %s17, 0
    %p153 = por %p151, %p152
    %s154 = sadd.s32 %s18, %s19
    %s155 = sadd.s32 %s37, %s33
    %s156 = ssub.s32 %s154, %s155
    %p157 = scmp.eq.s32.totalorder %s156, 0
    %s159 = sadd.s32 %s158, 1
    %s160 = scalar_select %p157, %s158, %s159
    %p163 = pneg %p157
    %p164 = scmp.eq.s32.totalorder %s11, 1
    %p165 = por %p163, %p164
    %p166 = scmp.ne.s32.totalorder %s158, %s161
    %p167 = scmp.eq.s32.totalorder %s11, 0
    %p168 = por %p166, %p167
    %p169 = scmp.ne.s32.totalorder %s158, %s161
    %p170 = scmp.eq.s32.totalorder %s16, 1
    %p171 = por %p169, %p170
    %p172 = scmp.ne.s32.totalorder %s161, %s162
    %p173 = scmp.eq.s32.totalorder %s16, 0
    %p174 = por %p172, %p173
    %p175 = scmp.ne.s32.totalorder %s161, %s162
    %p176 = scmp.eq.s32.totalorder %s17, 1
    %p177 = por %p175, %p176
    %p179 = scmp.ne.s32.totalorder %s162, %s178
    %p180 = scmp.eq.s32.totalorder %s17, 0
    %p181 = por %p179, %p180
    %p182 = scmp.le.s32.totalorder 1, %s11
    %p183 = scmp.lt.s32.totalorder %s11, 3
    %p184 = pnand %p182, %p183
    %p185 = pneg %p184
    // Predicated region
    $region9: #{weighted_cross_entropy_loss.1} parent=5 // pred_check
      _
    $region10: #{weighted_cross_entropy_loss.1} parent=5 // pred_check_branch
      %187 = sbr.rel (%p184) target = $region12
    $region11: #{weighted_cross_entropy_loss.1} parent=5 // pred_region
      %s188 = ssub.s32 %s11, 1
    $region12: #{weighted_cross_entropy_loss.1} parent=5 // pred_fallthru
      _
    %p189 = scmp.lt.s32.totalorder %s11, 2
    // Predicated region
    $region13: #{weighted_cross_entropy_loss.1} parent=5 // pred_check
      %p190 = pneg %p189
    $region14: #{weighted_cross_entropy_loss.1} parent=5 // pred_check_branch
      %192 = sbr.rel (%p190) target = $region16
    $region15: #{weighted_cross_entropy_loss.1} parent=5 // pred_region
      // Predicated region
      $region17: #{weighted_cross_entropy_loss.1} parent=15 // pred_check
        %p193 = pneg %p54
      $region18: #{weighted_cross_entropy_loss.1} parent=15 // pred_check_branch
        %195 = sbr.rel (%p193) target = $region20
      $region19: #{weighted_cross_entropy_loss.1} parent=15 // pred_region
        %s196 = sadd.s32 %s19, %s20
        %p197 = scmp.lt.s32.totalorder %s18, 1
        %s198 = scalar_select %p197, %s18, 1
        %p199 = scmp.lt.s32.totalorder %s196, 0
        %s200 = scalar_select %p199, %s196, 0
        %s201 = smul.addr %s198, 4
        %s202 = sadd.s32 %s200, %s201
        %s203 = smul.addr %s202, 4
        %s204 = scalar_lea.vmem %s0, %s203
        %s205 = sadd.s32 %s19, %s20
      $region20: #{weighted_cross_entropy_loss.1} parent=15 // pred_fallthru
        _
      // Predicated region
      $region21: #{weighted_cross_entropy_loss.1} parent=15 // pred_check
        %p206 = pneg %p84
      $region22: #{weighted_cross_entropy_loss.1} parent=15 // pred_check_branch
        %208 = sbr.rel (%p206) target = $region24
      $region23: #{weighted_cross_entropy_loss.1} parent=15 // pred_region
        %s209 = sadd.s32 %s19, %s20
        %p210 = scmp.lt.s32.totalorder %s18, 1
        %s211 = scalar_select %p210, %s18, 1
        %p212 = scmp.lt.s32.totalorder %s209, 0
        %s213 = scalar_select %p212, %s209, 0
        %s214 = sadd.s32 %s213, %s211
        %s215 = smul.addr %s214, 4
        %s216 = scalar_lea.vmem %s1, %s215
        %s217 = sadd.s32 %s19, %s20
      $region24: #{weighted_cross_entropy_loss.1} parent=15 // pred_fallthru
        _
    $region16: #{weighted_cross_entropy_loss.1} parent=5 // pred_fallthru
      _
    %p218 = scmp.le.s32.totalorder 1, %s11
    %p219 = scmp.lt.s32.totalorder %s11, 3
    %p220 = pnand %p218, %p219
    %p221 = pneg %p220
    // Predicated region
    $region25: #{weighted_cross_entropy_loss.1} parent=5 // pred_check
      _
    $region26: #{weighted_cross_entropy_loss.1} parent=5 // pred_check_branch
      %223 = sbr.rel (%p220) target = $region28
    $region27: #{weighted_cross_entropy_loss.1} parent=5 // pred_region
      %s224 = ssub.s32 %s11, 1
      %s225 = sadd.s32 %s22, %s23
      %p226 = scmp.lt.s32.totalorder %s21, 1
      %s227 = scalar_select %p226, %s21, 1
      %p228 = scmp.lt.s32.totalorder %s225, 0
      %s229 = scalar_select %p228, %s225, 0
      %s230 = smul.addr %s227, 4
      %s231 = sadd.s32 %s229, %s230
      %s232 = smul.addr %s231, 4
      %s233 = scalar_lea.vmem %s0, %s232
      %p234 = pneg %p60
      %p235 = pneg %p57
      %s236 = sadd.s32 %s22, %s23
      %p237 = scmp.lt.s32.totalorder %s21, 1
      %s238 = scalar_select %p237, %s21, 1
      %p239 = scmp.lt.s32.totalorder %s236, 0
      %s240 = scalar_select %p239, %s236, 0
      %s241 = sadd.s32 %s240, %s238
      %s242 = smul.addr %s241, 4
      %s243 = scalar_lea.vmem %s1, %s242
      %p244 = pneg %p90
      %p245 = pneg %p87
      %p246 = pneg %p118
      %p247 = pneg %p115
      %s248 = sadd.s32 %s21, %s22
      %p249 = scmp.lt.s32.totalorder %s248, 1
      %s250 = scalar_select %p249, %s248, 1
      %s251 = smul.addr %s250, 4
      %s252 = smul.addr %s251, 4
      %s253 = scalar_lea.vmem %s2, %s252
      %p254 = pneg %p146
      %p255 = pneg %p143
      %s256 = sadd.s32 %s21, %s22
      %p257 = scmp.lt.s32.totalorder %s256, 1
      %s258 = scalar_select %p257, %s256, 1
      %s259 = smul.addr %s258, 4
      %s260 = smul.addr %s259, 4
      %s261 = scalar_lea.vmem %s3, %s260
      %p262 = pneg %p174
      %p263 = pneg %p171
      %s264 = sadd.s32 %s21, %s22
      %p265 = scmp.lt.s32.totalorder %s264, 1
      %s266 = scalar_select %p265, %s264, 1
      %s267 = smul.addr %s266, 4
      %s268 = smul.addr %s267, 4
      %s269 = scalar_lea.vmem %s4, %s268
      %s270 = sadd.s32 %s22, %s23
      %p271 = scmp.lt.s32.totalorder %s21, 1
      %s272 = scalar_select %p271, %s21, 1
      %p273 = scmp.lt.s32.totalorder %s270, 0
      %s274 = scalar_select %p273, %s270, 0
      %s275 = smul.addr %s272, 4
      %s276 = sadd.s32 %s274, %s275
      %s277 = smul.addr %s276, 4
      %s278 = scalar_lea.vmem %s0, %s277
      %s279 = sadd.s32 %s22, %s23
      %s280 = sadd.s32 %s22, %s23
      %p281 = scmp.lt.s32.totalorder %s21, 1
      %s282 = scalar_select %p281, %s21, 1
      %p283 = scmp.lt.s32.totalorder %s280, 0
      %s284 = scalar_select %p283, %s280, 0
      %s285 = sadd.s32 %s284, %s282
      %s286 = smul.addr %s285, 4
      %s287 = scalar_lea.vmem %s1, %s286
      %s288 = sadd.s32 %s22, %s23
      %s289 = sadd.s32 %s21, %s22
      %p290 = scmp.lt.s32.totalorder %s289, 1
      %s291 = scalar_select %p290, %s289, 1
      %s292 = smul.addr %s291, 4
      %s293 = smul.addr %s292, 4
      %s294 = scalar_lea.vmem %s2, %s293
      %s295 = sadd.s32 %s21, %s22
      %s296 = sadd.s32 %s21, %s22
      %p297 = scmp.lt.s32.totalorder %s296, 1
      %s298 = scalar_select %p297, %s296, 1
      %s299 = smul.addr %s298, 4
      %s300 = smul.addr %s299, 4
      %s301 = scalar_lea.vmem %s3, %s300
      %s302 = sadd.s32 %s21, %s22
      %s303 = sadd.s32 %s21, %s22
      %p304 = scmp.lt.s32.totalorder %s303, 1
      %s305 = scalar_select %p304, %s303, 1
      %s306 = smul.addr %s305, 4
      %s307 = smul.addr %s306, 4
      %s308 = scalar_lea.vmem %s4, %s307
      %s309 = sadd.s32 %s21, %s22
      %p310 = scmp.eq.s32.totalorder %s23, 0
      // Predicated region
      $region29: #{weighted_cross_entropy_loss.1} parent=27 // pred_check
        %p311 = pneg %p310
      $region30: #{weighted_cross_entropy_loss.1} parent=27 // pred_check_branch
        %313 = sbr.rel (%p311) target = $region32
      $region31: #{weighted_cross_entropy_loss.1} parent=27 // pred_region
        %314 = vst [vmem:[%s294] sm:$0xf] 0.0
        %315 = vst [vmem:[%s294 + $0x4] sm:$0xf] 0.0
        %316 = vst [vmem:[%s294 + $0x8] sm:$0xf] 0.0
        %317 = vst [vmem:[%s294 + $0xc] sm:$0xf] 0.0
        %318 = vst [vmem:[%s301] sm:$0xf] 0.0
        %319 = vst [vmem:[%s301 + $0x4] sm:$0xf] 0.0
        %320 = vst [vmem:[%s301 + $0x8] sm:$0xf] 0.0
        %321 = vst [vmem:[%s301 + $0xc] sm:$0xf] 0.0
        %322 = vst [vmem:[%s308] sm:$0xf] 0.0
        %323 = vst [vmem:[%s308 + $0x4] sm:$0xf] 0.0
        %324 = vst [vmem:[%s308 + $0x8] sm:$0xf] 0.0
        %325 = vst [vmem:[%s308 + $0xc] sm:$0xf] 0.0
      $region32: #{weighted_cross_entropy_loss.1} parent=27 // pred_fallthru
        _
      %v326 = vld [vmem:[%s287] sm:$0xf]
      %v327 = vld [vmem:[%s278] sm:$0xf]
      %s328 = scalar_lea.vmem %s278, 4
      %v329 = vld [vmem:[%s328] sm:$0xf]
      %s330 = scalar_lea.vmem %s278, 8
      %v331 = vld [vmem:[%s330] sm:$0xf]
      %s332 = scalar_lea.vmem %s278, 12
      %v333 = vld [vmem:[%s332] sm:$0xf]
      %v334 = vmax.f32 %v327, %v329
      %v335 = vmax.f32 %v334, %v331
      %v336 = vmax.f32 %v335, %v333
      %v337 = vsub.f32 %v327, %v336
      %v338 = vmul.f32 %v337, 1.442695
      %v339 = vpow.pop %v338
      %v340 = vsub.f32 %v329, %v336
      %v341 = vmul.f32 %v340, 1.442695
      %v342 = vpow.pop %v341
      %v343 = vsub.f32 %v331, %v336
      %v344 = vmul.f32 %v343, 1.442695
      %v345 = vpow.pop %v344
      %v346 = vsub.f32 %v333, %v336
      %v347 = vmul.f32 %v346, 1.442695
      %v348 = vpow.pop %v347
      %v349 = vadd.f32 %v339, %v342
      %v350 = vadd.f32 %v349, %v345
      %v351 = vadd.f32 %v350, %v348
      %v352 = vrcp.pop %v351
      %v353 = vmul.f32 %v351, %v352
      %v354 = vsub.f32 1.0, %v353
      %v355 = vmul.f32 %v352, %v354
      %v356 = vadd.f32 %v352, %v355
      %vm357 = vweird.f32 %v351
      %vm358 = vweird.f32 %v352
      %vm359 = vmor %vm357, %vm358
      %v360 = vsel %vm359, %v352, %v356
      %v361 = vand.u32 2147483647, %v351
      %vm362 = vcmp.eq.f32.partialorder %v361, 8.507059e+37
      %v363 = vand.u32 %v351, 2147483648
      %v364 = vor.u32 1.1754944e-38, %v363
      %v365 = vsel %vm362, %v364, %v360
      %v366 = vlog2.pop %v351
      %v367 = vmul.f32 %v366, 0.6931472
      %v368 = vadd.f32 %v336, %v367
      %v369 = vmul.f32 %v339, %v365
      %vm370 = vcmp.eq.s32.totalorder %v326, 0
      %v371 = vsel %vm370, 1, 0
      %v372 = vcvt.s32.f32 %v371
      %v373 = vld [vmem:[%s294] sm:$0xf]
      %v374 = vadd.f32 %v373, %v369
      %375 = vst [vmem:[%s294] sm:$0xf] %v374
      %v376 = vld [vmem:[%s301] sm:$0xf]
      %v377 = vsub.f32 %v368, %v327
      %v378 = vmul.f32 %v372, %v377
      %v379 = vadd.f32 %v376, %v378
      %380 = vst [vmem:[%s301] sm:$0xf] %v379
      %v381 = vld [vmem:[%s308] sm:$0xf]
      %v382 = vadd.f32 %v381, %v372
      %383 = vst [vmem:[%s308] sm:$0xf] %v382
      %v384 = vmul.f32 %v342, %v365
      %vm385 = vcmp.eq.s32.totalorder %v326, 1
      %v386 = vsel %vm385, 1, 0
      %v387 = vcvt.s32.f32 %v386
      %s388 = scalar_lea.vmem %s294, 4
      %v389 = vld [vmem:[%s388] sm:$0xf]
      %v390 = vadd.f32 %v389, %v384
      %391 = vst [vmem:[%s388] sm:$0xf] %v390
      %s392 = scalar_lea.vmem %s301, 4
      %v393 = vld [vmem:[%s392] sm:$0xf]
      %v394 = vsub.f32 %v368, %v329
      %v395 = vmul.f32 %v387, %v394
      %v396 = vadd.f32 %v393, %v395
      %397 = vst [vmem:[%s392] sm:$0xf] %v396
      %s398 = scalar_lea.vmem %s308, 4
      %v399 = vld [vmem:[%s398] sm:$0xf]
      %v400 = vadd.f32 %v399, %v387
      %401 = vst [vmem:[%s398] sm:$0xf] %v400
      %v402 = vmul.f32 %v345, %v365
      %vm403 = vcmp.eq.s32.totalorder %v326, 2
      %v404 = vsel %vm403, 1, 0
      %v405 = vcvt.s32.f32 %v404
      %s406 = scalar_lea.vmem %s294, 8
      %v407 = vld [vmem:[%s406] sm:$0xf]
      %v408 = vadd.f32 %v407, %v402
      %409 = vst [vmem:[%s406] sm:$0xf] %v408
      %s410 = scalar_lea.vmem %s301, 8
      %v411 = vld [vmem:[%s410] sm:$0xf]
      %v412 = vsub.f32 %v368, %v331
      %v413 = vmul.f32 %v405, %v412
      %v414 = vadd.f32 %v411, %v413
      %415 = vst [vmem:[%s410] sm:$0xf] %v414
      %s416 = scalar_lea.vmem %s308, 8
      %v417 = vld [vmem:[%s416] sm:$0xf]
      %v418 = vadd.f32 %v417, %v405
      %419 = vst [vmem:[%s416] sm:$0xf] %v418
      %v420 = vmul.f32 %v348, %v365
      %vm421 = vcmp.eq.s32.totalorder %v326, 3
      %v422 = vsel %vm421, 1, 0
      %v423 = vcvt.s32.f32 %v422
      %s424 = scalar_lea.vmem %s294, 12
      %v425 = vld [vmem:[%s424] sm:$0xf]
      %v426 = vadd.f32 %v425, %v420
      %427 = vst [vmem:[%s424] sm:$0xf] %v426
      %s428 = scalar_lea.vmem %s301, 12
      %v429 = vld [vmem:[%s428] sm:$0xf]
      %v430 = vsub.f32 %v368, %v333
      %v431 = vmul.f32 %v423, %v430
      %v432 = vadd.f32 %v429, %v431
      %433 = vst [vmem:[%s428] sm:$0xf] %v432
      %s434 = scalar_lea.vmem %s308, 12
      %v435 = vld [vmem:[%s434] sm:$0xf]
      %v436 = vadd.f32 %v435, %v423
      %437 = vst [vmem:[%s434] sm:$0xf] %v436
      %s438 = sadd.s32 %s21, %s22
      %p439 = scmp.lt.s32.totalorder %s438, 1
      %s440 = scalar_select %p439, %s438, 1
      %s441 = smul.addr %s440, 4
      %s442 = smul.addr %s441, 4
      %s443 = scalar_lea.vmem %s2, %s442
      %s444 = sadd.s32 %s21, %s22
      %p445 = scmp.lt.s32.totalorder %s444, 1
      %s446 = scalar_select %p445, %s444, 1
      %s447 = smul.addr %s446, 4
      %s448 = smul.addr %s447, 4
      %s449 = scalar_lea.vmem %s3, %s448
      %s450 = sadd.s32 %s21, %s22
      %p451 = scmp.lt.s32.totalorder %s450, 1
      %s452 = scalar_select %p451, %s450, 1
      %s453 = smul.addr %s452, 4
      %s454 = smul.addr %s453, 4
      %s455 = scalar_lea.vmem %s4, %s454
      // Predicated region
      $region33: #{weighted_cross_entropy_loss.1} parent=27 // pred_check
        %p456 = pneg %p115
      $region34: #{weighted_cross_entropy_loss.1} parent=27 // pred_check_branch
        %458 = sbr.rel (%p456) target = $region36
      $region35: #{weighted_cross_entropy_loss.1} parent=27 // pred_region
        %s459 = sadd.s32 %s21, %s22
      $region36: #{weighted_cross_entropy_loss.1} parent=27 // pred_fallthru
        _
      // Predicated region
      $region37: #{weighted_cross_entropy_loss.1} parent=27 // pred_check
        %p460 = pneg %p143
      $region38: #{weighted_cross_entropy_loss.1} parent=27 // pred_check_branch
        %462 = sbr.rel (%p460) target = $region40
      $region39: #{weighted_cross_entropy_loss.1} parent=27 // pred_region
        %s463 = sadd.s32 %s21, %s22
      $region40: #{weighted_cross_entropy_loss.1} parent=27 // pred_fallthru
        _
      // Predicated region
      $region41: #{weighted_cross_entropy_loss.1} parent=27 // pred_check
        %p464 = pneg %p171
      $region42: #{weighted_cross_entropy_loss.1} parent=27 // pred_check_branch
        %466 = sbr.rel (%p464) target = $region44
      $region43: #{weighted_cross_entropy_loss.1} parent=27 // pred_region
        %s467 = sadd.s32 %s21, %s22
      $region44: #{weighted_cross_entropy_loss.1} parent=27 // pred_fallthru
        _
    $region28: #{weighted_cross_entropy_loss.1} parent=5 // pred_fallthru
      _
    %p468 = scmp.le.s32.totalorder 2, %s11
    // Predicated region
    $region45: #{weighted_cross_entropy_loss.1} parent=5 // pred_check
      %p469 = pneg %p468
    $region46: #{weighted_cross_entropy_loss.1} parent=5 // pred_check_branch
      %471 = sbr.rel (%p469) target = $region48
    $region47: #{weighted_cross_entropy_loss.1} parent=5 // pred_region
      %s472 = ssub.s32 %s11, 2
      // Predicated region
      $region49: #{weighted_cross_entropy_loss.1} parent=47 // pred_check
        %p473 = pneg %p121
      $region50: #{weighted_cross_entropy_loss.1} parent=47 // pred_check_branch
        %475 = sbr.rel (%p473) target = $region52
      $region51: #{weighted_cross_entropy_loss.1} parent=47 // pred_region
        %s476 = sadd.s32 %s24, %s25
        %p477 = scmp.lt.s32.totalorder %s476, 1
        %s478 = scalar_select %p477, %s476, 1
        %s479 = smul.addr %s478, 4
        %s480 = smul.addr %s479, 4
        %s481 = scalar_lea.vmem %s2, %s480
      $region52: #{weighted_cross_entropy_loss.1} parent=47 // pred_fallthru
        _
      // Predicated region
      $region53: #{weighted_cross_entropy_loss.1} parent=47 // pred_check
        %p482 = pneg %p149
      $region54: #{weighted_cross_entropy_loss.1} parent=47 // pred_check_branch
        %484 = sbr.rel (%p482) target = $region56
      $region55: #{weighted_cross_entropy_loss.1} parent=47 // pred_region
        %s485 = sadd.s32 %s24, %s25
        %p486 = scmp.lt.s32.totalorder %s485, 1
        %s487 = scalar_select %p486, %s485, 1
        %s488 = smul.addr %s487, 4
        %s489 = smul.addr %s488, 4
        %s490 = scalar_lea.vmem %s3, %s489
      $region56: #{weighted_cross_entropy_loss.1} parent=47 // pred_fallthru
        _
      // Predicated region
      $region57: #{weighted_cross_entropy_loss.1} parent=47 // pred_check
        %p491 = pneg %p177
      $region58: #{weighted_cross_entropy_loss.1} parent=47 // pred_check_branch
        %493 = sbr.rel (%p491) target = $region60
      $region59: #{weighted_cross_entropy_loss.1} parent=47 // pred_region
        %s494 = sadd.s32 %s24, %s25
        %p495 = scmp.lt.s32.totalorder %s494, 1
        %s496 = scalar_select %p495, %s494, 1
        %s497 = smul.addr %s496, 4
        %s498 = smul.addr %s497, 4
        %s499 = scalar_lea.vmem %s4, %s498
      $region60: #{weighted_cross_entropy_loss.1} parent=47 // pred_fallthru
        _
    $region48: #{weighted_cross_entropy_loss.1} parent=5 // pred_fallthru
      _
  $region6: #{weighted_cross_entropy_loss.1} parent=0 // loop_footer
    %s15 = sadd.s32 1, %s11
  $region7: #{weighted_cross_entropy_loss.1} parent=0 // loop_footer_branch
    %10 = sbr.rel target = $region3
  $region8: #{weighted_cross_entropy_loss.1} parent=0 // loop_exit
    _

</llo_original>
